<compile_context>
chip_gen: v7x
topology: tpu7x:2x2x1
jax: 0.10.0
libtpu: 0.0.40
codegen_flags: <defaults>
</compile_context>

<pallas_src>
import functools

import jax
import jax.numpy as jnp
import numpy as np
from jax.experimental import pallas as pl
from jax.experimental.pallas import tpu as pltpu


def _single_layer_kernel(x_ref, scale_ref, bias_ref, w_ref, mask_ref, out_ref,
                         *, width, c_pad):
    # x_ref    : (1, C, BL)      Bn images folded into lanes (BL = Bn*H*W)
    # scale_ref, bias_ref : (C, 1)   folded BN affine
    # w_ref    : (G, 9*c_pad)    conv weights, column = (dh*3+dw)*c_pad + c
    # mask_ref : (9*c_pad, BL)   1.0 where tap (dh, dw) is in-bounds, else 0.0
    # out_ref  : (1, C+G, BL)
    _, C, BL = x_ref.shape
    x = x_ref[0]                                                   # (C, BL)

    # ---- BatchNorm (folded affine) + ReLU6 — lane-dense VPU work ----
    a = jnp.clip(x * scale_ref[...] + bias_ref[...], 0.0, 6.0)     # (C, BL)

    # Pad channels once to an 8-sublane-aligned slab (zero rows contribute
    # nothing: the matching w_mat columns are zero).
    if c_pad > C:
        a = jnp.concatenate(
            [a, jnp.zeros((c_pad - C, BL), jnp.float32)], axis=0)  # (c_pad, BL)

    # ---- im2col: 8 static lane rolls (XLU slot), aligned 8-row taps ----
    taps = []
    for dh in range(3):
        for dw in range(3):
            off = (dh - 1) * width + (dw - 1)
            taps.append(a if off == 0 else
                        pltpu.roll(a, shift=(-off) % BL, axis=1))
    # One dense multiply applies every border mask (and zeroes anything a roll
    # dragged across an image boundary of the folded lane axis).
    patches = jnp.concatenate(taps, axis=0) * mask_ref[...]        # (9c_pad,BL)

    # ---- single fused MXU matmul: (G, 9*c_pad) x (9*c_pad, BL) -> (G, BL) ----
    conv = jnp.dot(w_ref[...], patches,
                   precision=jax.lax.Precision.HIGHEST,
                   preferred_element_type=jnp.float32)             # (G, BL)

    # ---- channel concat via two direct lane-dense slice stores ----
    out_ref[0, :C, :] = x.astype(out_ref.dtype)
    out_ref[0, C:, :] = conv.astype(out_ref.dtype)


@functools.partial(jax.jit, static_argnames=("eps", "block_n"))
def single_layer(x_nchw, gamma, beta, running_mean, running_var, conv_w,
                 eps=1e-5, block_n=None):
    """x_nchw: (N, C, H, W) float32; conv_w: (G, C, 3, 3) PyTorch OIHW."""
    N, C, H, W = x_nchw.shape
    G = conv_w.shape[0]
    L = H * W
    C_pad = -(-C // 8) * 8          # sublane-align the im2col channel slots

    # --- batch blocking: Bn images folded into the lane axis per grid step --
    # Keep >=2 grid steps when N>=2 (both v7x TensorCores busy); cap Bn so the
    # per-step VMEM (~0.25 MiB per image here) stays well below v5e's 16 MiB
    # default scoped limit.  bn_max can be raised on v6e/v7x for big batches.
    if block_n is None:
        bn_max = 16
        Bn = 1 if N <= 1 else min(bn_max, max(1, N // 2))
    else:
        Bn = block_n
    NB = -(-N // Bn)
    Npad = NB * Bn
    BL = Bn * L

    x = x_nchw.reshape(N, C, L).astype(jnp.float32)
    if Npad != N:
        x = jnp.pad(x, ((0, Npad - N), (0, 0), (0, 0)))
    # Fold Bn images into lanes: (NB, C, Bn*L).  One XLA layout pass.
    xb = jnp.transpose(x.reshape(NB, Bn, C, L), (0, 2, 1, 3)).reshape(NB, C, BL)

    # --- fold BN running stats into per-channel scale/bias (eval mode) -----
    gamma = gamma.astype(jnp.float32)
    inv_std = 1.0 / jnp.sqrt(running_var.astype(jnp.float32) + eps)
    scale = (gamma * inv_std).reshape(C, 1)
    bias = (beta.astype(jnp.float32)
            - running_mean.astype(jnp.float32) * gamma * inv_std).reshape(C, 1)

    # --- (G, C, 3, 3) OIHW -> (G, 9*C_pad); column = (dh*3+dw)*C_pad + c ----
    w_t = jnp.transpose(conv_w.astype(jnp.float32), (0, 2, 3, 1))   # (G,3,3,C)
    w_t = jnp.pad(w_t, ((0, 0), (0, 0), (0, 0), (0, C_pad - C)))
    w_mat = w_t.reshape(G, 9 * C_pad)

    # --- static border masks in patch layout, tiled over the folded batch ---
    hh, ww = np.meshgrid(np.arange(H), np.arange(W), indexing="ij")
    m9 = np.zeros((9, L), np.float32)
    for dh in range(3):
        for dw in range(3):
            valid = ((hh + dh - 1 >= 0) & (hh + dh - 1 < H)
                     & (ww + dw - 1 >= 0) & (ww + dw - 1 < W))
            m9[dh * 3 + dw] = valid.reshape(L)
    masks = jnp.asarray(np.tile(np.repeat(m9, C_pad, axis=0), (1, Bn)))

    out = pl.pallas_call(
        functools.partial(_single_layer_kernel, width=W, c_pad=C_pad),
        out_shape=jax.ShapeDtypeStruct((NB, C + G, BL), jnp.float32),
        grid=(NB,),
        in_specs=[
            pl.BlockSpec((1, C, BL), lambda n: (n, 0, 0)),
            pl.BlockSpec((C, 1), lambda n: (0, 0)),             # resident
            pl.BlockSpec((C, 1), lambda n: (0, 0)),             # resident
            pl.BlockSpec((G, 9 * C_pad), lambda n: (0, 0)),     # resident
            pl.BlockSpec((9 * C_pad, BL), lambda n: (0, 0)),    # resident
        ],
        out_specs=pl.BlockSpec((1, C + G, BL), lambda n: (n, 0, 0)),
        compiler_params=pltpu.CompilerParams(
            dimension_semantics=("parallel",)),
    )(xb, scale, bias, w_mat, masks)

    # Unfold lanes back to NCHW (matches torch.cat((x, conv), 1)).
    out = jnp.transpose(out.reshape(NB, C + G, Bn, L),
                        (0, 2, 1, 3)).reshape(Npad, C + G, H, W)
    return out[:N] if Npad != N else out


def _reference(x_nchw, gamma, beta, mean, var, conv_w, eps=1e-5):
    inv = 1.0 / jnp.sqrt(var + eps)
    s = (gamma * inv)[None, :, None, None]
    b = (beta - mean * gamma * inv)[None, :, None, None]
    act = jnp.clip(x_nchw * s + b, 0.0, 6.0)
    conv = jax.lax.conv_general_dilated(
        act, conv_w, window_strides=(1, 1), padding=((1, 1), (1, 1)),
        dimension_numbers=("NCHW", "OIHW", "NCHW"),
        precision=jax.lax.Precision.HIGHEST)
    return jnp.concatenate([x_nchw, conv], axis=1)


if __name__ == "__main__":
    key = jax.random.PRNGKey(0)
    kx, kw, kg, kb, km, kv = jax.random.split(key, 6)

    C, H, W = 4, 16, 16          # nChannels, spatial
    G = 8                        # growthRate

    # Deterministic synthetic parameters (BatchNorm2d + Conv2d 3x3, no bias).
    gamma = 1.0 + 0.1 * jax.random.normal(kg, (C,), jnp.float32)
    beta = 0.1 * jax.random.normal(kb, (C,), jnp.float32)
    running_mean = 0.1 * jax.random.normal(km, (C,), jnp.float32)
    running_var = 1.0 + 0.1 * jax.random.uniform(kv, (C,), jnp.float32)
    conv_w = (jax.random.normal(kw, (G, C, 3, 3), jnp.float32)
              * (1.0 / np.sqrt(C * 9)))

    # Primary case (N=2, the reported shape) plus a batch size that exercises
    # batch-blocking (Bn > 1) and the ragged batch-padding path.
    for N in (2, 5):
        x = jax.random.normal(kx, (N, C, H, W), jnp.float32)
        out = jax.block_until_ready(
            single_layer(x, gamma, beta, running_mean, running_var, conv_w))
        ref = _reference(x, gamma, beta, running_mean, running_var, conv_w)
        assert out.shape == (N, C + G, H, W), out.shape
        np.testing.assert_allclose(np.asarray(out), np.asarray(ref),
                                   rtol=1e-4, atol=1e-4)

    print("KERNEL_OK")
</pallas_src>

<mosaic_0001>
module attributes {stable_mosaic.version = 11 : i64} {
  func.func @_single_layer_kernel(%arg0: i32, %arg1: memref<1x4x256xf32, #tpu.memory_space<vmem>>, %arg2: memref<4x1xf32, #tpu.memory_space<vmem>>, %arg3: memref<4x1xf32, #tpu.memory_space<vmem>>, %arg4: memref<8x72xf32, #tpu.memory_space<vmem>>, %arg5: memref<72x256xf32, #tpu.memory_space<vmem>>, %arg6: memref<1x12x256xf32, #tpu.memory_space<vmem>>) attributes {dimension_semantics = [#tpu.dimension_semantics<parallel>], iteration_bounds = array<i64: 2>, scalar_prefetch = 0 : i64, scratch_operands = 0 : i64, tpu.core_type = #tpu.core_type<tc>, window_params = [{transform_indices = @transform_0, window_bounds = array<i64: 1, 4, 256>}, {pipeline_mode = #tpu.pipeline_mode<synchronous>, transform_indices = @transform_1, window_bounds = array<i64: 4, 1>}, {pipeline_mode = #tpu.pipeline_mode<synchronous>, transform_indices = @transform_2, window_bounds = array<i64: 4, 1>}, {pipeline_mode = #tpu.pipeline_mode<synchronous>, transform_indices = @transform_3, window_bounds = array<i64: 8, 72>}, {pipeline_mode = #tpu.pipeline_mode<synchronous>, transform_indices = @transform_4, window_bounds = array<i64: 72, 256>}, {transform_indices = @transform_5, window_bounds = array<i64: 1, 12, 256>}]} {
    %c0 = arith.constant 0 : index
    %c0_0 = arith.constant 0 : index
    %c0_1 = arith.constant 0 : index
    %0 = vector.load %arg1[%c0, %c0_0, %c0_1] : memref<1x4x256xf32, #tpu.memory_space<vmem>>, vector<1x4x256xf32>
    %1 = vector.shape_cast %0 : vector<1x4x256xf32> to vector<4x256xf32>
    %c0_2 = arith.constant 0 : index
    %c0_3 = arith.constant 0 : index
    %2 = vector.load %arg2[%c0_2, %c0_3] : memref<4x1xf32, #tpu.memory_space<vmem>>, vector<4x1xf32>
    %3 = vector.broadcast %2 : vector<4x1xf32> to vector<4x256xf32>
    %4 = arith.mulf %1, %3 : vector<4x256xf32>
    %c0_4 = arith.constant 0 : index
    %c0_5 = arith.constant 0 : index
    %5 = vector.load %arg3[%c0_4, %c0_5] : memref<4x1xf32, #tpu.memory_space<vmem>>, vector<4x1xf32>
    %6 = vector.broadcast %5 : vector<4x1xf32> to vector<4x256xf32>
    %7 = arith.addf %4, %6 : vector<4x256xf32>
    %cst = arith.constant 0.000000e+00 : f32
    %cst_6 = arith.constant 6.000000e+00 : f32
    %8 = vector.broadcast %cst : f32 to vector<4x256xf32>
    %9 = arith.maximumf %8, %7 : vector<4x256xf32>
    %10 = vector.broadcast %cst_6 : f32 to vector<4x256xf32>
    %11 = arith.minimumf %10, %9 : vector<4x256xf32>
    %cst_7 = arith.constant 0.000000e+00 : f32
    %12 = vector.broadcast %cst_7 : f32 to vector<4x256xf32>
    %13 = tpu.concatenate %11, %12 in 0 : vector<4x256xf32>, vector<4x256xf32> -> vector<8x256xf32>
    %c17_i32 = arith.constant 17 : i32
    %14 = tpu.dynamic_rotate %13 by %c17_i32 dim 1 : vector<8x256xf32>, i32 -> vector<8x256xf32>
    %c16_i32 = arith.constant 16 : i32
    %15 = tpu.dynamic_rotate %13 by %c16_i32 dim 1 : vector<8x256xf32>, i32 -> vector<8x256xf32>
    %c15_i32 = arith.constant 15 : i32
    %16 = tpu.dynamic_rotate %13 by %c15_i32 dim 1 : vector<8x256xf32>, i32 -> vector<8x256xf32>
    %c1_i32 = arith.constant 1 : i32
    %17 = tpu.dynamic_rotate %13 by %c1_i32 dim 1 : vector<8x256xf32>, i32 -> vector<8x256xf32>
    %c255_i32 = arith.constant 255 : i32
    %18 = tpu.dynamic_rotate %13 by %c255_i32 dim 1 : vector<8x256xf32>, i32 -> vector<8x256xf32>
    %c241_i32 = arith.constant 241 : i32
    %19 = tpu.dynamic_rotate %13 by %c241_i32 dim 1 : vector<8x256xf32>, i32 -> vector<8x256xf32>
    %c240_i32 = arith.constant 240 : i32
    %20 = tpu.dynamic_rotate %13 by %c240_i32 dim 1 : vector<8x256xf32>, i32 -> vector<8x256xf32>
    %c239_i32 = arith.constant 239 : i32
    %21 = tpu.dynamic_rotate %13 by %c239_i32 dim 1 : vector<8x256xf32>, i32 -> vector<8x256xf32>
    %22 = tpu.concatenate %14, %15, %16, %17, %13, %18, %19, %20, %21 in 0 : vector<8x256xf32>, vector<8x256xf32>, vector<8x256xf32>, vector<8x256xf32>, vector<8x256xf32>, vector<8x256xf32>, vector<8x256xf32>, vector<8x256xf32>, vector<8x256xf32> -> vector<72x256xf32>
    %c0_8 = arith.constant 0 : index
    %c0_9 = arith.constant 0 : index
    %23 = vector.load %arg5[%c0_8, %c0_9] : memref<72x256xf32, #tpu.memory_space<vmem>>, vector<72x256xf32>
    %24 = arith.mulf %22, %23 : vector<72x256xf32>
    %c0_10 = arith.constant 0 : index
    %c0_11 = arith.constant 0 : index
    %25 = vector.load %arg4[%c0_10, %c0_11] : memref<8x72xf32, #tpu.memory_space<vmem>>, vector<8x72xf32>
    %cst_12 = arith.constant dense<0.000000e+00> : vector<8x256xf32>
    %26 = tpu.matmul %25, %24, %cst_12 {dimension_numbers = #tpu.dot_dimension_numbers<[1], [0], [0], [1], [0, 0, 1, 1], [], []>, precision = #tpu.contract_precision<fp32>} : vector<8x72xf32>, vector<72x256xf32>, vector<8x256xf32> -> vector<8x256xf32>
    %c0_13 = arith.constant 0 : index
    %c0_14 = arith.constant 0 : index
    %c0_15 = arith.constant 0 : index
    %27 = vector.load %arg6[%c0_13, %c0_14, %c0_15] : memref<1x12x256xf32, #tpu.memory_space<vmem>>, vector<1x4x256xf32>
    %28 = vector.shape_cast %27 : vector<1x4x256xf32> to vector<4x256xf32>
    %29 = vector.shape_cast %1 : vector<4x256xf32> to vector<1x4x256xf32>
    tpu.vector_store %arg6[%c0_13, %c0_14, %c0_15], %29 {strides = array<i32>} : memref<1x12x256xf32, #tpu.memory_space<vmem>>, vector<1x4x256xf32>,
    %c0_16 = arith.constant 0 : index
    %c4 = arith.constant 4 : index
    %c0_17 = arith.constant 0 : index
    %30 = vector.load %arg6[%c0_16, %c4, %c0_17] : memref<1x12x256xf32, #tpu.memory_space<vmem>>, vector<1x8x256xf32>
    %31 = vector.shape_cast %30 : vector<1x8x256xf32> to vector<8x256xf32>
    %32 = vector.shape_cast %26 : vector<8x256xf32> to vector<1x8x256xf32>
    tpu.vector_store %arg6[%c0_16, %c4, %c0_17], %32 {strides = array<i32>} : memref<1x12x256xf32, #tpu.memory_space<vmem>>, vector<1x8x256xf32>,
    return
  }
  func.func @transform_0(%arg0: i32) -> (i32, i32, i32) {
    %c0_i32 = arith.constant 0 : i32
    %c0_i32_0 = arith.constant 0 : i32
    %c0_i32_1 = arith.constant 0 : i32
    return %arg0, %c0_i32, %c0_i32_0 : i32, i32, i32
  }
  func.func @transform_1(%arg0: i32) -> (i32, i32) {
    %c0_i32 = arith.constant 0 : i32
    %c0_i32_0 = arith.constant 0 : i32
    %c0_i32_1 = arith.constant 0 : i32
    return %c0_i32, %c0_i32_0 : i32, i32
  }
  func.func @transform_2(%arg0: i32) -> (i32, i32) {
    %c0_i32 = arith.constant 0 : i32
    %c0_i32_0 = arith.constant 0 : i32
    %c0_i32_1 = arith.constant 0 : i32
    return %c0_i32, %c0_i32_0 : i32, i32
  }
  func.func @transform_3(%arg0: i32) -> (i32, i32) {
    %c0_i32 = arith.constant 0 : i32
    %c0_i32_0 = arith.constant 0 : i32
    %c0_i32_1 = arith.constant 0 : i32
    return %c0_i32, %c0_i32_0 : i32, i32
  }
  func.func @transform_4(%arg0: i32) -> (i32, i32) {
    %c0_i32 = arith.constant 0 : i32
    %c0_i32_0 = arith.constant 0 : i32
    %c0_i32_1 = arith.constant 0 : i32
    return %c0_i32, %c0_i32_0 : i32, i32
  }
  func.func @transform_5(%arg0: i32) -> (i32, i32, i32) {
    %c0_i32 = arith.constant 0 : i32
    %c0_i32_0 = arith.constant 0 : i32
    %c0_i32_1 = arith.constant 0 : i32
    return %arg0, %c0_i32, %c0_i32_0 : i32, i32, i32
  }
}

</mosaic_0001>

<llo_original>
// kernel: single_layer.1
$region0: #{single_layer.1}
  #allocation0 [shape = 'u32[]', space=smem, size = 0x4, offset = 0x4, fixed_abs, tag = 'smem constant byte address 0x4 - core index']
  #allocation1 [shape = 'u32[144,128]{1,0:T(1,128)}', space=vmem, size = 0x12000, scoped, tag = 'internal scratch']
  %s0 = inlined_call_operand.vmem [shape: f32[2,4,256], index: 0, kind: input, shape index: {}]
  %s1 = inlined_call_operand.vmem [shape: f32[4,1], index: 1, kind: input, shape index: {}]
  %s2 = inlined_call_operand.vmem [shape: f32[4,1], index: 2, kind: input, shape index: {}]
  %s3 = inlined_call_operand.vmem [shape: f32[8,72], index: 3, kind: input, shape index: {}]
  %s4 = inlined_call_operand.vmem [shape: f32[72,256], index: 4, kind: input, shape index: {}]
  %s5 = inlined_call_operand.vmem [shape: f32[2,12,256], index: 5, kind: output, shape index: {}]
  %s6 = sld [smem:[#allocation0]]
  $region53: #{single_layer.1} parent=0
    _
  %s8 = ssub.s32 1, %s6
  %s9 = scalar_select 0, %s8, %s6
  loop: start=0, step=1, limit=4
  $region2: #{single_layer.1} parent=0 // loop_pre_header
    _
  $region3: #{single_layer.1} parent=0 // loop_header
    %s11 = sphi 0, %s15
    %p12 = scmp.ge.s32.totalorder %s11, 4
    %s21 = sphi 0, %s23
    %s24 = sphi 0, %s21
    %s25 = sphi 0, %s24
    %s41 = sphi 0, %s25
    %s45 = sphi 0, %s45
    %s47 = sphi 0, %s45
    %s48 = sphi 0, %s47
    %s62 = sphi 0, %s48
    %s66 = sphi 0, %s66
    %s68 = sphi 0, %s66
    %s69 = sphi 0, %s68
    %s83 = sphi 0, %s69
    %s87 = sphi 0, %s87
    %s89 = sphi 0, %s87
    %s90 = sphi 0, %s89
    %s104 = sphi 0, %s90
    %s108 = sphi 0, %s108
    %s110 = sphi 0, %s108
    %s111 = sphi 0, %s110
    %s125 = sphi 0, %s111
    %s131 = sphi 0, %s133
    %s134 = sphi 0, %s131
    %s135 = sphi 0, %s134
    %s151 = sphi 0, %s135
  $region4: #{single_layer.1} parent=0 // loop_header_branch
    %14 = sbr.rel (%p12) target = $region8
  $region5: #{single_layer.1} parent=0 // loop_body
    %s16 = ssub.s32 %s11, 1
    %s17 = ssub.s32 %s11, 2
    %s18 = sadd.s32 %s11, 1
    %s19 = ssub.s32 %s11, %s18
    %p20 = scmp.eq.s32.totalorder %s19, 0
    %s22 = sadd.s32 %s21, 1
    %s23 = scalar_select %p20, %s21, %s22
    %p26 = pneg %p20
    %p27 = scmp.eq.s32.totalorder %s11, 1
    %p28 = por %p26, %p27
    %p29 = scmp.ne.s32.totalorder %s21, %s24
    %p30 = scmp.eq.s32.totalorder %s11, 0
    %p31 = por %p29, %p30
    %p32 = scmp.ne.s32.totalorder %s21, %s24
    %p33 = scmp.eq.s32.totalorder %s16, 1
    %p34 = por %p32, %p33
    %p35 = scmp.ne.s32.totalorder %s24, %s25
    %p36 = scmp.eq.s32.totalorder %s16, 0
    %p37 = por %p35, %p36
    %p38 = scmp.ne.s32.totalorder %s24, %s25
    %p39 = scmp.eq.s32.totalorder %s17, 1
    %p40 = por %p38, %p39
    %p42 = scmp.ne.s32.totalorder %s25, %s41
    %p43 = scmp.eq.s32.totalorder %s17, 0
    %p44 = por %p42, %p43
    %s46 = sadd.s32 %s45, 1
    %p49 = scmp.eq.s32.totalorder %s11, 1
    %p50 = scmp.ne.s32.totalorder %s45, %s47
    %p51 = scmp.eq.s32.totalorder %s11, 0
    %p52 = por %p50, %p51
    %p53 = scmp.ne.s32.totalorder %s45, %s47
    %p54 = scmp.eq.s32.totalorder %s16, 1
    %p55 = por %p53, %p54
    %p56 = scmp.ne.s32.totalorder %s47, %s48
    %p57 = scmp.eq.s32.totalorder %s16, 0
    %p58 = por %p56, %p57
    %p59 = scmp.ne.s32.totalorder %s47, %s48
    %p60 = scmp.eq.s32.totalorder %s17, 1
    %p61 = por %p59, %p60
    %p63 = scmp.ne.s32.totalorder %s48, %s62
    %p64 = scmp.eq.s32.totalorder %s17, 0
    %p65 = por %p63, %p64
    %s67 = sadd.s32 %s66, 1
    %p70 = scmp.eq.s32.totalorder %s11, 1
    %p71 = scmp.ne.s32.totalorder %s66, %s68
    %p72 = scmp.eq.s32.totalorder %s11, 0
    %p73 = por %p71, %p72
    %p74 = scmp.ne.s32.totalorder %s66, %s68
    %p75 = scmp.eq.s32.totalorder %s16, 1
    %p76 = por %p74, %p75
    %p77 = scmp.ne.s32.totalorder %s68, %s69
    %p78 = scmp.eq.s32.totalorder %s16, 0
    %p79 = por %p77, %p78
    %p80 = scmp.ne.s32.totalorder %s68, %s69
    %p81 = scmp.eq.s32.totalorder %s17, 1
    %p82 = por %p80, %p81
    %p84 = scmp.ne.s32.totalorder %s69, %s83
    %p85 = scmp.eq.s32.totalorder %s17, 0
    %p86 = por %p84, %p85
    %s88 = sadd.s32 %s87, 1
    %p91 = scmp.eq.s32.totalorder %s11, 1
    %p92 = scmp.ne.s32.totalorder %s87, %s89
    %p93 = scmp.eq.s32.totalorder %s11, 0
    %p94 = por %p92, %p93
    %p95 = scmp.ne.s32.totalorder %s87, %s89
    %p96 = scmp.eq.s32.totalorder %s16, 1
    %p97 = por %p95, %p96
    %p98 = scmp.ne.s32.totalorder %s89, %s90
    %p99 = scmp.eq.s32.totalorder %s16, 0
    %p100 = por %p98, %p99
    %p101 = scmp.ne.s32.totalorder %s89, %s90
    %p102 = scmp.eq.s32.totalorder %s17, 1
    %p103 = por %p101, %p102
    %p105 = scmp.ne.s32.totalorder %s90, %s104
    %p106 = scmp.eq.s32.totalorder %s17, 0
    %p107 = por %p105, %p106
    %s109 = sadd.s32 %s108, 1
    %p112 = scmp.eq.s32.totalorder %s11, 1
    %p113 = scmp.ne.s32.totalorder %s108, %s110
    %p114 = scmp.eq.s32.totalorder %s11, 0
    %p115 = por %p113, %p114
    %p116 = scmp.ne.s32.totalorder %s108, %s110
    %p117 = scmp.eq.s32.totalorder %s16, 1
    %p118 = por %p116, %p117
    %p119 = scmp.ne.s32.totalorder %s110, %s111
    %p120 = scmp.eq.s32.totalorder %s16, 0
    %p121 = por %p119, %p120
    %p122 = scmp.ne.s32.totalorder %s110, %s111
    %p123 = scmp.eq.s32.totalorder %s17, 1
    %p124 = por %p122, %p123
    %p126 = scmp.ne.s32.totalorder %s111, %s125
    %p127 = scmp.eq.s32.totalorder %s17, 0
    %p128 = por %p126, %p127
    %s129 = ssub.s32 %s11, %s18
    %p130 = scmp.eq.s32.totalorder %s129, 0
    %s132 = sadd.s32 %s131, 1
    %s133 = scalar_select %p130, %s131, %s132
    %p136 = pneg %p130
    %p137 = scmp.eq.s32.totalorder %s11, 1
    %p138 = por %p136, %p137
    %p139 = scmp.ne.s32.totalorder %s131, %s134
    %p140 = scmp.eq.s32.totalorder %s11, 0
    %p141 = por %p139, %p140
    %p142 = scmp.ne.s32.totalorder %s131, %s134
    %p143 = scmp.eq.s32.totalorder %s16, 1
    %p144 = por %p142, %p143
    %p145 = scmp.ne.s32.totalorder %s134, %s135
    %p146 = scmp.eq.s32.totalorder %s16, 0
    %p147 = por %p145, %p146
    %p148 = scmp.ne.s32.totalorder %s134, %s135
    %p149 = scmp.eq.s32.totalorder %s17, 1
    %p150 = por %p148, %p149
    %p152 = scmp.ne.s32.totalorder %s135, %s151
    %p153 = scmp.eq.s32.totalorder %s17, 0
    %p154 = por %p152, %p153
    %p155 = scmp.le.s32.totalorder 1, %s11
    %p156 = scmp.lt.s32.totalorder %s11, 3
    %p157 = pnand %p155, %p156
    %p158 = pneg %p157
    // Predicated region
    $region9: #{single_layer.1} parent=5 // pred_check
      _
    $region10: #{single_layer.1} parent=5 // pred_check_branch
      %160 = sbr.rel (%p157) target = $region12
    $region11: #{single_layer.1} parent=5 // pred_region
      %s161 = ssub.s32 %s11, 1
      // Predicated region
      $region13: #{single_layer.1} parent=11 // pred_check
        %p162 = pneg %p58
      $region14: #{single_layer.1} parent=11 // pred_check_branch
        %164 = sbr.rel (%p162) target = $region16
      $region15: #{single_layer.1} parent=11 // pred_region
        _
      $region16: #{single_layer.1} parent=11 // pred_fallthru
        _
      // Predicated region
      $region17: #{single_layer.1} parent=11 // pred_check
        %p165 = pneg %p79
      $region18: #{single_layer.1} parent=11 // pred_check_branch
        %167 = sbr.rel (%p165) target = $region20
      $region19: #{single_layer.1} parent=11 // pred_region
        _
      $region20: #{single_layer.1} parent=11 // pred_fallthru
        _
      // Predicated region
      $region21: #{single_layer.1} parent=11 // pred_check
        %p168 = pneg %p100
      $region22: #{single_layer.1} parent=11 // pred_check_branch
        %170 = sbr.rel (%p168) target = $region24
      $region23: #{single_layer.1} parent=11 // pred_region
        _
      $region24: #{single_layer.1} parent=11 // pred_fallthru
        _
      // Predicated region
      $region25: #{single_layer.1} parent=11 // pred_check
        %p171 = pneg %p121
      $region26: #{single_layer.1} parent=11 // pred_check_branch
        %173 = sbr.rel (%p171) target = $region28
      $region27: #{single_layer.1} parent=11 // pred_region
        _
      $region28: #{single_layer.1} parent=11 // pred_fallthru
        _
    $region12: #{single_layer.1} parent=5 // pred_fallthru
      _
    %p174 = scmp.lt.s32.totalorder %s11, 2
    // Predicated region
    $region29: #{single_layer.1} parent=5 // pred_check
      %p175 = pneg %p174
    $region30: #{single_layer.1} parent=5 // pred_check_branch
      %177 = sbr.rel (%p175) target = $region32
    $region31: #{single_layer.1} parent=5 // pred_region
      // Predicated region
      $region33: #{single_layer.1} parent=31 // pred_check
        %p178 = pneg %p31
      $region34: #{single_layer.1} parent=31 // pred_check_branch
        %180 = sbr.rel (%p178) target = $region36
      $region35: #{single_layer.1} parent=31 // pred_region
        %p181 = scmp.lt.s32.totalorder %s11, 1
        %s182 = scalar_select %p181, %s11, 1
        %s183 = smul.addr %s182, 2
        %s184 = smul.addr %s183, 4
        %s185 = scalar_lea.vmem %s0, %s184
      $region36: #{single_layer.1} parent=31 // pred_fallthru
        _
    $region32: #{single_layer.1} parent=5 // pred_fallthru
      _
    %p186 = scmp.le.s32.totalorder 1, %s11
    %p187 = scmp.lt.s32.totalorder %s11, 3
    %p188 = pnand %p186, %p187
    %p189 = pneg %p188
    // Predicated region
    $region37: #{single_layer.1} parent=5 // pred_check
      _
    $region38: #{single_layer.1} parent=5 // pred_check_branch
      %191 = sbr.rel (%p188) target = $region40
    $region39: #{single_layer.1} parent=5 // pred_region
      %s192 = ssub.s32 %s11, 1
      %p193 = scmp.lt.s32.totalorder %s16, 1
      %s194 = scalar_select %p193, %s16, 1
      %s195 = smul.addr %s194, 2
      %s196 = smul.addr %s195, 4
      %s197 = scalar_lea.vmem %s0, %s196
      %p198 = pneg %p37
      %p199 = pneg %p34
      %p200 = pneg %p58
      %p201 = pneg %p55
      %p202 = pneg %p79
      %p203 = pneg %p76
      %p204 = pneg %p100
      %p205 = pneg %p97
      %p206 = pneg %p121
      %p207 = pneg %p118
      %p208 = pneg %p147
      %p209 = pneg %p144
      %p210 = scmp.lt.s32.totalorder %s16, 1
      %s211 = scalar_select %p210, %s16, 1
      %s212 = smul.addr %s211, 4
      %s213 = smul.addr %s212, 8
      %s214 = scalar_lea.vmem %s5, %s213
      %p215 = scmp.lt.s32.totalorder %s16, 1
      %s216 = scalar_select %p215, %s16, 1
      %s217 = smul.addr %s216, 2
      %s218 = smul.addr %s217, 4
      %s219 = scalar_lea.vmem %s0, %s218
      %p220 = scmp.lt.s32.totalorder %s16, 1
      %s221 = scalar_select %p220, %s16, 1
      %s222 = smul.addr %s221, 4
      %s223 = smul.addr %s222, 8
      %s224 = scalar_lea.vmem %s5, %s223
      %v225 = vld [vmem:[%s219] sm:$0xff]
      %v226 = vld [vmem:[%s1] sm:$0xf]
      %228 = vset.pattern.permute.xlu0 0
      %229 = vperm.xlu0 %228, %v226
      %v230 = vpop.permute.xlu0 %229
      %v232 = vunpack.c.l.s4 839922192
      %v233 = vunpack.c.0.s8 %v232
      %v234 = vlaneseq
      %v235 = vshrl.u32 %v234, 7
      %v236 = vsub.s32 %v233, %v235
      %v237 = vrot.slane %v230, %v236
      %v239 = vmul.f32 %v225, %v237
      %v240 = vld [vmem:[%s2] sm:$0xf]
      %242 = vset.pattern.permute.xlu0 0
      %243 = vperm.xlu0 %242, %v240
      %v244 = vpop.permute.xlu0 %243
      %v246 = vunpack.c.l.s4 839922192
      %v247 = vunpack.c.0.s8 %v246
      %v248 = vlaneseq
      %v249 = vshrl.u32 %v248, 7
      %v250 = vsub.s32 %v247, %v249
      %v251 = vrot.slane %v244, %v250
      %v253 = vadd.f32 %v239, %v251
      %v254 = vmax.f32 %v253, 0.0
      %v255 = vmin.f32 %v254, 6.0
      %v257 = vcombine.high %v255, %v255
      %vm259 = vcmask 1043456
      %v260 = vsel %vm259, %v255, 0.0
      %v261 = vsel %vm259, %v257, 0.0
      %262 = vrot.lane.b32.xlu0 %v260, 17
      %v263 = vpop.permute.xlu0 %262
      %264 = vrot.lane.b32.xlu0 %v261, 17
      %v265 = vpop.permute.xlu0 %264
      %v266 = vlaneseq
      %v267 = vand.u32 %v266, 127
      %vm268 = vcmp.lt.s32.totalorder %v267, 17
      %v269 = vsel %vm268, %v263, %v265
      %v270 = vsel %vm268, %v265, %v263
      %271 = vrot.lane.b32.xlu0 %v260, 16
      %v272 = vpop.permute.xlu0 %271
      %273 = vrot.lane.b32.xlu0 %v261, 16
      %v274 = vpop.permute.xlu0 %273
      %vm275 = vcmp.lt.s32.totalorder %v267, 16
      %v276 = vsel %vm275, %v272, %v274
      %v277 = vsel %vm275, %v274, %v272
      %278 = vrot.lane.b32.xlu0 %v260, 15
      %v279 = vpop.permute.xlu0 %278
      %280 = vrot.lane.b32.xlu0 %v261, 15
      %v281 = vpop.permute.xlu0 %280
      %vm282 = vcmp.lt.s32.totalorder %v267, 15
      %v283 = vsel %vm282, %v279, %v281
      %v284 = vsel %vm282, %v281, %v279
      %285 = vrot.lane.b32.xlu0 %v260, 1
      %v286 = vpop.permute.xlu0 %285
      %287 = vrot.lane.b32.xlu0 %v261, 1
      %v288 = vpop.permute.xlu0 %287
      %vm289 = vcmp.lt.s32.totalorder %v267, 1
      %v290 = vsel %vm289, %v286, %v288
      %v291 = vsel %vm289, %v288, %v286
      %292 = vrot.lane.b32.xlu0 %v260, 127
      %v293 = vpop.permute.xlu0 %292
      %294 = vrot.lane.b32.xlu0 %v261, 127
      %v295 = vpop.permute.xlu0 %294
      %vm296 = vcmp.lt.s32.totalorder %v267, 127
      %v297 = vsel %vm296, %v293, %v295
      %v298 = vsel %vm296, %v295, %v293
      %299 = vrot.lane.b32.xlu0 %v260, 113
      %v300 = vpop.permute.xlu0 %299
      %301 = vrot.lane.b32.xlu0 %v261, 113
      %v302 = vpop.permute.xlu0 %301
      %vm303 = vcmp.lt.s32.totalorder %v267, 113
      %v304 = vsel %vm303, %v300, %v302
      %v305 = vsel %vm303, %v302, %v300
      %306 = vrot.lane.b32.xlu0 %v260, 112
      %v307 = vpop.permute.xlu0 %306
      %308 = vrot.lane.b32.xlu0 %v261, 112
      %v309 = vpop.permute.xlu0 %308
      %vm310 = vcmp.lt.s32.totalorder %v267, 112
      %v311 = vsel %vm310, %v307, %v309
      %v312 = vsel %vm310, %v309, %v307
      %313 = vrot.lane.b32.xlu0 %v260, 111
      %v314 = vpop.permute.xlu0 %313
      %315 = vrot.lane.b32.xlu0 %v261, 111
      %v316 = vpop.permute.xlu0 %315
      %vm317 = vcmp.lt.s32.totalorder %v267, 111
      %v318 = vsel %vm317, %v314, %v316
      %v319 = vsel %vm317, %v316, %v314
      %v320 = vld [vmem:[%s4] sm:$0xff]
      %v321 = vld [vmem:[%s4 + $0x8] sm:$0xff]
      %v322 = vld [vmem:[%s4 + $0x10] sm:$0xff]
      %v323 = vld [vmem:[%s4 + $0x18] sm:$0xff]
      %v324 = vld [vmem:[%s4 + $0x20] sm:$0xff]
      %v325 = vld [vmem:[%s4 + $0x28] sm:$0xff]
      %v326 = vld [vmem:[%s4 + $0x30] sm:$0xff]
      %v327 = vld [vmem:[%s4 + $0x38] sm:$0xff]
      %v328 = vld [vmem:[%s4 + $0x40] sm:$0xff]
      %v329 = vld [vmem:[%s4 + $0x48] sm:$0xff]
      %v330 = vld [vmem:[%s4 + $0x50] sm:$0xff]
      %v331 = vld [vmem:[%s4 + $0x58] sm:$0xff]
      %v332 = vld [vmem:[%s4 + $0x60] sm:$0xff]
      %v333 = vld [vmem:[%s4 + $0x68] sm:$0xff]
      %v334 = vld [vmem:[%s4 + $0x70] sm:$0xff]
      %v335 = vld [vmem:[%s4 + $0x78] sm:$0xff]
      %v336 = vld [vmem:[%s4 + $0x80] sm:$0xff]
      %v337 = vld [vmem:[%s4 + $0x88] sm:$0xff]
      %v338 = vmul.f32 %v270, %v320
      %v339 = vmul.f32 %v269, %v321
      %v340 = vmul.f32 %v277, %v322
      %v341 = vmul.f32 %v276, %v323
      %v342 = vmul.f32 %v284, %v324
      %v343 = vmul.f32 %v283, %v325
      %v344 = vmul.f32 %v291, %v326
      %v345 = vmul.f32 %v290, %v327
      %v346 = vmul.f32 %v260, %v328
      %v347 = vmul.f32 %v261, %v329
      %v348 = vmul.f32 %v297, %v330
      %v349 = vmul.f32 %v298, %v331
      %v350 = vmul.f32 %v304, %v332
      %v351 = vmul.f32 %v305, %v333
      %v352 = vmul.f32 %v311, %v334
      %v353 = vmul.f32 %v312, %v335
      %v354 = vmul.f32 %v318, %v336
      %v355 = vmul.f32 %v319, %v337
      %v356 = vld [vmem:[%s3] sm:$0xff]
      %vm357 = vcmask 588800
      %v359 = vsel %vm357, %v356, 0
      %v361 = vand.u32 %v339, 4294901760
      %362 = vmatprep.subr.mxu0 %v361
      %v363 = vand.u32 %v338, 4294901760
      %364 = vmatpush1.msra.mxu0 %v363
      %v365 = vand.u32 %v341, 4294901760
      %366 = vmatprep.subr.mxu0 %v365
      %v367 = vand.u32 %v340, 4294901760
      %368 = vmatpush1.msra.mxu0 %v367
      %v369 = vand.u32 %v343, 4294901760
      %370 = vmatprep.subr.mxu0 %v369
      %v371 = vand.u32 %v342, 4294901760
      %372 = vmatpush1.msra.mxu0 %v371
      %v373 = vand.u32 %v345, 4294901760
      %374 = vmatprep.subr.mxu0 %v373
      %v375 = vand.u32 %v344, 4294901760
      %376 = vmatpush1.msra.mxu0 %v375
      %v377 = vand.u32 %v347, 4294901760
      %378 = vmatprep.subr.mxu0 %v377
      %v379 = vand.u32 %v346, 4294901760
      %380 = vmatpush1.msra.mxu0 %v379
      %v381 = vand.u32 %v349, 4294901760
      %382 = vmatprep.subr.mxu0 %v381
      %v383 = vand.u32 %v348, 4294901760
      %384 = vmatpush1.msra.mxu0 %v383
      %v385 = vand.u32 %v351, 4294901760
      %386 = vmatprep.subr.mxu0 %v385
      %v387 = vand.u32 %v350, 4294901760
      %388 = vmatpush1.msra.mxu0 %v387
      %v389 = vand.u32 %v353, 4294901760
      %390 = vmatprep.subr.mxu0 %v389
      %v391 = vand.u32 %v352, 4294901760
      %392 = vmatpush1.msra.mxu0 %v391
      %v393 = vand.u32 %v355, 4294901760
      %394 = vmatprep.subr.mxu0 %v393
      %v395 = vand.u32 %v354, 4294901760
      %396 = vmatpush1.msra.mxu0 %v395
      %397 = vmatprep.subr.mxu0 0.0
      %398 = vmatpush1.msra.mxu0 0.0
      %399 = vmatprep.subr.mxu0 0.0
      %400 = vmatpush1.msra.mxu0 0.0
      %401 = vmatprep.subr.mxu0 0.0
      %402 = vmatpush1.msra.mxu0 0.0
      %403 = vmatprep.subr.mxu0 0.0
      %404 = vmatpush1.msra.mxu0 0.0
      %405 = vmatprep.subr.mxu0 0.0
      %406 = vmatpush1.msra.mxu0 0.0
      %407 = vmatprep.subr.mxu0 0.0
      %408 = vmatpush1.msra.mxu0 0.0
      %409 = vmatprep.subr.mxu0 0.0
      %410 = vmatpush1.msra.mxu0 0.0
      %411 = vmatprep.subr.mxu0 0.0
      %412 = vmatpush1.msra.mxu0 0.0
      %413 = vmatprep.subr.mxu0 0.0
      %414 = vmatpush1.msra.mxu0 0.0
      %415 = vmatprep.subr.mxu0 0.0
      %416 = vmatpush1.msra.mxu0 0.0
      %417 = vmatprep.subr.mxu0 0.0
      %418 = vmatpush1.msra.mxu0 0.0
      %419 = vmatprep.subr.mxu0 0.0
      %420 = vmatpush1.msra.mxu0 0.0
      %421 = vmatprep.subr.mxu0 0.0
      %422 = vmatpush1.msra.mxu0 0.0
      %423 = vmatprep.subr.mxu0 0.0
      %424 = vmatpush1.msra.mxu0 0.0
      %425 = vmatprep.subr.mxu0 0.0
      %426 = vmatpush1.msra.mxu0 0.0
      %427 = vmatprep.subr.mxu0 0.0
      %428 = vmatpush1.msra.mxu0 0.0
      %429 = vmatprep.subr.mxu0 0.0
      %430 = vmatpush1.msra.mxu0 0.0
      %431 = vmatprep.subr.mxu0 0.0
      %432 = vmatpush1.msra.mxu0 0.0
      %433 = vmatprep.subr.mxu0 0.0
      %434 = vmatpush1.msra.mxu0 0.0
      %435 = vmatprep.subr.mxu0 0.0
      %436 = vmatpush1.msra.mxu0 0.0
      %437 = vmatprep.subr.mxu0 0.0
      %438 = vmatpush1.msra.mxu0 0.0
      %439 = vmatprep.subr.mxu0 0.0
      %440 = vmatpush1.msra.mxu0 0.0
      %441 = vmatprep.subr.mxu0 0.0
      %442 = vmatpush1.msra.mxu0 0.0
      %443 = vmatprep.mubr.f32.mxu0 0.0
      %v444 = vand.u32 %v359, 4294901760
      %v445 = vsub.f32 %v359, %v444
      %v446 = vand.u32 %v445, 4294901760
      %v447 = vsub.f32 %v445, %v446
      %v448 = vand.u32 %v447, 4294901760
      %449 = vmatmul.mubr.f32.gmra.mrb[0].mxu0 %v448
      %v450 = vpop.f32.mrb[0].mxu0
      %v451 = vadd.f32 0.0, %v450
      %v452 = vpop.f32.mrb[0].mxu0
      %v453 = vadd.f32 0.0, %v452
      %454 = vdwg.mxu0
      %v455 = vand.u32 %v339, 4294901760
      %v456 = vsub.f32 %v339, %v455
      %v457 = vand.u32 %v456, 4294901760
      %v458 = vsub.f32 %v456, %v457
      %v459 = vand.u32 %v458, 4294901760
      %460 = vmatprep.subr.mxu0 %v459
      %v461 = vand.u32 %v338, 4294901760
      %v462 = vsub.f32 %v338, %v461
      %v463 = vand.u32 %v462, 4294901760
      %v464 = vsub.f32 %v462, %v463
      %v465 = vand.u32 %v464, 4294901760
      %466 = vmatpush1.msra.mxu0 %v465
      %v467 = vand.u32 %v341, 4294901760
      %v468 = vsub.f32 %v341, %v467
      %v469 = vand.u32 %v468, 4294901760
      %v470 = vsub.f32 %v468, %v469
      %v471 = vand.u32 %v470, 4294901760
      %472 = vmatprep.subr.mxu0 %v471
      %v473 = vand.u32 %v340, 4294901760
      %v474 = vsub.f32 %v340, %v473
      %v475 = vand.u32 %v474, 4294901760
      %v476 = vsub.f32 %v474, %v475
      %v477 = vand.u32 %v476, 4294901760
      %478 = vmatpush1.msra.mxu0 %v477
      %v479 = vand.u32 %v343, 4294901760
      %v480 = vsub.f32 %v343, %v479
      %v481 = vand.u32 %v480, 4294901760
      %v482 = vsub.f32 %v480, %v481
      %v483 = vand.u32 %v482, 4294901760
      %484 = vmatprep.subr.mxu0 %v483
      %v485 = vand.u32 %v342, 4294901760
      %v486 = vsub.f32 %v342, %v485
      %v487 = vand.u32 %v486, 4294901760
      %v488 = vsub.f32 %v486, %v487
      %v489 = vand.u32 %v488, 4294901760
      %490 = vmatpush1.msra.mxu0 %v489
      %v491 = vand.u32 %v345, 4294901760
      %v492 = vsub.f32 %v345, %v491
      %v493 = vand.u32 %v492, 4294901760
      %v494 = vsub.f32 %v492, %v493
      %v495 = vand.u32 %v494, 4294901760
      %496 = vmatprep.subr.mxu0 %v495
      %v497 = vand.u32 %v344, 4294901760
      %v498 = vsub.f32 %v344, %v497
      %v499 = vand.u32 %v498, 4294901760
      %v500 = vsub.f32 %v498, %v499
      %v501 = vand.u32 %v500, 4294901760
      %502 = vmatpush1.msra.mxu0 %v501
      %v503 = vand.u32 %v347, 4294901760
      %v504 = vsub.f32 %v347, %v503
      %v505 = vand.u32 %v504, 4294901760
      %v506 = vsub.f32 %v504, %v505
      %v507 = vand.u32 %v506, 4294901760
      %508 = vmatprep.subr.mxu0 %v507
      %v509 = vand.u32 %v346, 4294901760
      %v510 = vsub.f32 %v346, %v509
      %v511 = vand.u32 %v510, 4294901760
      %v512 = vsub.f32 %v510, %v511
      %v513 = vand.u32 %v512, 4294901760
      %514 = vmatpush1.msra.mxu0 %v513
      %v515 = vand.u32 %v349, 4294901760
      %v516 = vsub.f32 %v349, %v515
      %v517 = vand.u32 %v516, 4294901760
      %v518 = vsub.f32 %v516, %v517
      %v519 = vand.u32 %v518, 4294901760
      %520 = vmatprep.subr.mxu0 %v519
      %v521 = vand.u32 %v348, 4294901760
      %v522 = vsub.f32 %v348, %v521
      %v523 = vand.u32 %v522, 4294901760
      %v524 = vsub.f32 %v522, %v523
      %v525 = vand.u32 %v524, 4294901760
      %526 = vmatpush1.msra.mxu0 %v525
      %v527 = vand.u32 %v351, 4294901760
      %v528 = vsub.f32 %v351, %v527
      %v529 = vand.u32 %v528, 4294901760
      %v530 = vsub.f32 %v528, %v529
      %v531 = vand.u32 %v530, 4294901760
      %532 = vmatprep.subr.mxu0 %v531
      %v533 = vand.u32 %v350, 4294901760
      %v534 = vsub.f32 %v350, %v533
      %v535 = vand.u32 %v534, 4294901760
      %v536 = vsub.f32 %v534, %v535
      %v537 = vand.u32 %v536, 4294901760
      %538 = vmatpush1.msra.mxu0 %v537
      %v539 = vand.u32 %v353, 4294901760
      %v540 = vsub.f32 %v353, %v539
      %v541 = vand.u32 %v540, 4294901760
      %v542 = vsub.f32 %v540, %v541
      %v543 = vand.u32 %v542, 4294901760
      %544 = vmatprep.subr.mxu0 %v543
      %v545 = vand.u32 %v352, 4294901760
      %v546 = vsub.f32 %v352, %v545
      %v547 = vand.u32 %v546, 4294901760
      %v548 = vsub.f32 %v546, %v547
      %v549 = vand.u32 %v548, 4294901760
      %550 = vmatpush1.msra.mxu0 %v549
      %v551 = vand.u32 %v355, 4294901760
      %v552 = vsub.f32 %v355, %v551
      %v553 = vand.u32 %v552, 4294901760
      %v554 = vsub.f32 %v552, %v553
      %v555 = vand.u32 %v554, 4294901760
      %556 = vmatprep.subr.mxu0 %v555
      %v557 = vand.u32 %v354, 4294901760
      %v558 = vsub.f32 %v354, %v557
      %v559 = vand.u32 %v558, 4294901760
      %v560 = vsub.f32 %v558, %v559
      %v561 = vand.u32 %v560, 4294901760
      %562 = vmatpush1.msra.mxu0 %v561
      %563 = vmatprep.subr.mxu0 0.0
      %564 = vmatpush1.msra.mxu0 0.0
      %565 = vmatprep.subr.mxu0 0.0
      %566 = vmatpush1.msra.mxu0 0.0
      %567 = vmatprep.subr.mxu0 0.0
      %568 = vmatpush1.msra.mxu0 0.0
      %569 = vmatprep.subr.mxu0 0.0
      %570 = vmatpush1.msra.mxu0 0.0
      %571 = vmatprep.subr.mxu0 0.0
      %572 = vmatpush1.msra.mxu0 0.0
      %573 = vmatprep.subr.mxu0 0.0
      %574 = vmatpush1.msra.mxu0 0.0
      %575 = vmatprep.subr.mxu0 0.0
      %576 = vmatpush1.msra.mxu0 0.0
      %577 = vmatprep.subr.mxu0 0.0
      %578 = vmatpush1.msra.mxu0 0.0
      %579 = vmatprep.subr.mxu0 0.0
      %580 = vmatpush1.msra.mxu0 0.0
      %581 = vmatprep.subr.mxu0 0.0
      %582 = vmatpush1.msra.mxu0 0.0
      %583 = vmatprep.subr.mxu0 0.0
      %584 = vmatpush1.msra.mxu0 0.0
      %585 = vmatprep.subr.mxu0 0.0
      %586 = vmatpush1.msra.mxu0 0.0
      %587 = vmatprep.subr.mxu0 0.0
      %588 = vmatpush1.msra.mxu0 0.0
      %589 = vmatprep.subr.mxu0 0.0
      %590 = vmatpush1.msra.mxu0 0.0
      %591 = vmatprep.subr.mxu0 0.0
      %592 = vmatpush1.msra.mxu0 0.0
      %593 = vmatprep.subr.mxu0 0.0
      %594 = vmatpush1.msra.mxu0 0.0
      %595 = vmatprep.subr.mxu0 0.0
      %596 = vmatpush1.msra.mxu0 0.0
      %597 = vmatprep.subr.mxu0 0.0
      %598 = vmatpush1.msra.mxu0 0.0
      %599 = vmatprep.subr.mxu0 0.0
      %600 = vmatpush1.msra.mxu0 0.0
      %601 = vmatprep.subr.mxu0 0.0
      %602 = vmatpush1.msra.mxu0 0.0
      %603 = vmatprep.subr.mxu0 0.0
      %604 = vmatpush1.msra.mxu0 0.0
      %605 = vmatprep.subr.mxu0 0.0
      %606 = vmatpush1.msra.mxu0 0.0
      %607 = vmatprep.subr.mxu0 0.0
      %608 = vmatpush1.msra.mxu0 0.0
      %609 = vmatprep.mubr.f32.mxu0 0.0
      %v610 = vand.u32 %v359, 4294901760
      %611 = vmatmul.mubr.f32.gmra.mrb[0].mxu0 %v610
      %v612 = vpop.f32.mrb[0].mxu0
      %v613 = vadd.f32 %v451, %v612
      %v614 = vpop.f32.mrb[0].mxu0
      %v615 = vadd.f32 %v453, %v614
      %616 = vdwg.mxu0
      %v617 = vand.u32 %v339, 4294901760
      %v618 = vsub.f32 %v339, %v617
      %619 = vmatprep.subr.mxu0 %v618
      %v620 = vand.u32 %v338, 4294901760
      %v621 = vsub.f32 %v338, %v620
      %622 = vmatpush1.msra.mxu0 %v621
      %v623 = vand.u32 %v341, 4294901760
      %v624 = vsub.f32 %v341, %v623
      %625 = vmatprep.subr.mxu0 %v624
      %v626 = vand.u32 %v340, 4294901760
      %v627 = vsub.f32 %v340, %v626
      %628 = vmatpush1.msra.mxu0 %v627
      %v629 = vand.u32 %v343, 4294901760
      %v630 = vsub.f32 %v343, %v629
      %631 = vmatprep.subr.mxu0 %v630
      %v632 = vand.u32 %v342, 4294901760
      %v633 = vsub.f32 %v342, %v632
      %634 = vmatpush1.msra.mxu0 %v633
      %v635 = vand.u32 %v345, 4294901760
      %v636 = vsub.f32 %v345, %v635
      %637 = vmatprep.subr.mxu0 %v636
      %v638 = vand.u32 %v344, 4294901760
      %v639 = vsub.f32 %v344, %v638
      %640 = vmatpush1.msra.mxu0 %v639
      %v641 = vand.u32 %v347, 4294901760
      %v642 = vsub.f32 %v347, %v641
      %643 = vmatprep.subr.mxu0 %v642
      %v644 = vand.u32 %v346, 4294901760
      %v645 = vsub.f32 %v346, %v644
      %646 = vmatpush1.msra.mxu0 %v645
      %v647 = vand.u32 %v349, 4294901760
      %v648 = vsub.f32 %v349, %v647
      %649 = vmatprep.subr.mxu0 %v648
      %v650 = vand.u32 %v348, 4294901760
      %v651 = vsub.f32 %v348, %v650
      %652 = vmatpush1.msra.mxu0 %v651
      %v653 = vand.u32 %v351, 4294901760
      %v654 = vsub.f32 %v351, %v653
      %655 = vmatprep.subr.mxu0 %v654
      %v656 = vand.u32 %v350, 4294901760
      %v657 = vsub.f32 %v350, %v656
      %658 = vmatpush1.msra.mxu0 %v657
      %v659 = vand.u32 %v353, 4294901760
      %v660 = vsub.f32 %v353, %v659
      %661 = vmatprep.subr.mxu0 %v660
      %v662 = vand.u32 %v352, 4294901760
      %v663 = vsub.f32 %v352, %v662
      %664 = vmatpush1.msra.mxu0 %v663
      %v665 = vand.u32 %v355, 4294901760
      %v666 = vsub.f32 %v355, %v665
      %667 = vmatprep.subr.mxu0 %v666
      %v668 = vand.u32 %v354, 4294901760
      %v669 = vsub.f32 %v354, %v668
      %670 = vmatpush1.msra.mxu0 %v669
      %671 = vmatprep.subr.mxu0 0.0
      %672 = vmatpush1.msra.mxu0 0.0
      %673 = vmatprep.subr.mxu0 0.0
      %674 = vmatpush1.msra.mxu0 0.0
      %675 = vmatprep.subr.mxu0 0.0
      %676 = vmatpush1.msra.mxu0 0.0
      %677 = vmatprep.subr.mxu0 0.0
      %678 = vmatpush1.msra.mxu0 0.0
      %679 = vmatprep.subr.mxu0 0.0
      %680 = vmatpush1.msra.mxu0 0.0
      %681 = vmatprep.subr.mxu0 0.0
      %682 = vmatpush1.msra.mxu0 0.0
      %683 = vmatprep.subr.mxu0 0.0
      %684 = vmatpush1.msra.mxu0 0.0
      %685 = vmatprep.subr.mxu0 0.0
      %686 = vmatpush1.msra.mxu0 0.0
      %687 = vmatprep.subr.mxu0 0.0
      %688 = vmatpush1.msra.mxu0 0.0
      %689 = vmatprep.subr.mxu0 0.0
      %690 = vmatpush1.msra.mxu0 0.0
      %691 = vmatprep.subr.mxu0 0.0
      %692 = vmatpush1.msra.mxu0 0.0
      %693 = vmatprep.subr.mxu0 0.0
      %694 = vmatpush1.msra.mxu0 0.0
      %695 = vmatprep.subr.mxu0 0.0
      %696 = vmatpush1.msra.mxu0 0.0
      %697 = vmatprep.subr.mxu0 0.0
      %698 = vmatpush1.msra.mxu0 0.0
      %699 = vmatprep.subr.mxu0 0.0
      %700 = vmatpush1.msra.mxu0 0.0
      %701 = vmatprep.subr.mxu0 0.0
      %702 = vmatpush1.msra.mxu0 0.0
      %703 = vmatprep.subr.mxu0 0.0
      %704 = vmatpush1.msra.mxu0 0.0
      %705 = vmatprep.subr.mxu0 0.0
      %706 = vmatpush1.msra.mxu0 0.0
      %707 = vmatprep.subr.mxu0 0.0
      %708 = vmatpush1.msra.mxu0 0.0
      %709 = vmatprep.subr.mxu0 0.0
      %710 = vmatpush1.msra.mxu0 0.0
      %711 = vmatprep.subr.mxu0 0.0
      %712 = vmatpush1.msra.mxu0 0.0
      %713 = vmatprep.subr.mxu0 0.0
      %714 = vmatpush1.msra.mxu0 0.0
      %715 = vmatprep.subr.mxu0 0.0
      %716 = vmatpush1.msra.mxu0 0.0
      %717 = vmatprep.mubr.f32.mxu0 0.0
      %v718 = vand.u32 %v359, 4294901760
      %v719 = vsub.f32 %v359, %v718
      %720 = vmatmul.mubr.f32.gmra.mrb[0].mxu0 %v719
      %v721 = vpop.f32.mrb[0].mxu0
      %v722 = vadd.f32 %v613, %v721
      %v723 = vpop.f32.mrb[0].mxu0
      %v724 = vadd.f32 %v615, %v723
      %725 = vdwg.mxu0
      %v726 = vand.u32 %v339, 4294901760
      %727 = vmatprep.subr.mxu0 %v726
      %v728 = vand.u32 %v338, 4294901760
      %729 = vmatpush1.msra.mxu0 %v728
      %v730 = vand.u32 %v341, 4294901760
      %731 = vmatprep.subr.mxu0 %v730
      %v732 = vand.u32 %v340, 4294901760
      %733 = vmatpush1.msra.mxu0 %v732
      %v734 = vand.u32 %v343, 4294901760
      %735 = vmatprep.subr.mxu0 %v734
      %v736 = vand.u32 %v342, 4294901760
      %737 = vmatpush1.msra.mxu0 %v736
      %v738 = vand.u32 %v345, 4294901760
      %739 = vmatprep.subr.mxu0 %v738
      %v740 = vand.u32 %v344, 4294901760
      %741 = vmatpush1.msra.mxu0 %v740
      %v742 = vand.u32 %v347, 4294901760
      %743 = vmatprep.subr.mxu0 %v742
      %v744 = vand.u32 %v346, 4294901760
      %745 = vmatpush1.msra.mxu0 %v744
      %v746 = vand.u32 %v349, 4294901760
      %747 = vmatprep.subr.mxu0 %v746
      %v748 = vand.u32 %v348, 4294901760
      %749 = vmatpush1.msra.mxu0 %v748
      %v750 = vand.u32 %v351, 4294901760
      %751 = vmatprep.subr.mxu0 %v750
      %v752 = vand.u32 %v350, 4294901760
      %753 = vmatpush1.msra.mxu0 %v752
      %v754 = vand.u32 %v353, 4294901760
      %755 = vmatprep.subr.mxu0 %v754
      %v756 = vand.u32 %v352, 4294901760
      %757 = vmatpush1.msra.mxu0 %v756
      %v758 = vand.u32 %v355, 4294901760
      %759 = vmatprep.subr.mxu0 %v758
      %v760 = vand.u32 %v354, 4294901760
      %761 = vmatpush1.msra.mxu0 %v760
      %762 = vmatprep.subr.mxu0 0.0
      %763 = vmatpush1.msra.mxu0 0.0
      %764 = vmatprep.subr.mxu0 0.0
      %765 = vmatpush1.msra.mxu0 0.0
      %766 = vmatprep.subr.mxu0 0.0
      %767 = vmatpush1.msra.mxu0 0.0
      %768 = vmatprep.subr.mxu0 0.0
      %769 = vmatpush1.msra.mxu0 0.0
      %770 = vmatprep.subr.mxu0 0.0
      %771 = vmatpush1.msra.mxu0 0.0
      %772 = vmatprep.subr.mxu0 0.0
      %773 = vmatpush1.msra.mxu0 0.0
      %774 = vmatprep.subr.mxu0 0.0
      %775 = vmatpush1.msra.mxu0 0.0
      %776 = vmatprep.subr.mxu0 0.0
      %777 = vmatpush1.msra.mxu0 0.0
      %778 = vmatprep.subr.mxu0 0.0
      %779 = vmatpush1.msra.mxu0 0.0
      %780 = vmatprep.subr.mxu0 0.0
      %781 = vmatpush1.msra.mxu0 0.0
      %782 = vmatprep.subr.mxu0 0.0
      %783 = vmatpush1.msra.mxu0 0.0
      %784 = vmatprep.subr.mxu0 0.0
      %785 = vmatpush1.msra.mxu0 0.0
      %786 = vmatprep.subr.mxu0 0.0
      %787 = vmatpush1.msra.mxu0 0.0
      %788 = vmatprep.subr.mxu0 0.0
      %789 = vmatpush1.msra.mxu0 0.0
      %790 = vmatprep.subr.mxu0 0.0
      %791 = vmatpush1.msra.mxu0 0.0
      %792 = vmatprep.subr.mxu0 0.0
      %793 = vmatpush1.msra.mxu0 0.0
      %794 = vmatprep.subr.mxu0 0.0
      %795 = vmatpush1.msra.mxu0 0.0
      %796 = vmatprep.subr.mxu0 0.0
      %797 = vmatpush1.msra.mxu0 0.0
      %798 = vmatprep.subr.mxu0 0.0
      %799 = vmatpush1.msra.mxu0 0.0
      %800 = vmatprep.subr.mxu0 0.0
      %801 = vmatpush1.msra.mxu0 0.0
      %802 = vmatprep.subr.mxu0 0.0
      %803 = vmatpush1.msra.mxu0 0.0
      %804 = vmatprep.subr.mxu0 0.0
      %805 = vmatpush1.msra.mxu0 0.0
      %806 = vmatprep.subr.mxu0 0.0
      %807 = vmatpush1.msra.mxu0 0.0
      %808 = vmatprep.mubr.f32.mxu0 0.0
      %v809 = vand.u32 %v359, 4294901760
      %v810 = vsub.f32 %v359, %v809
      %v811 = vand.u32 %v810, 4294901760
      %812 = vmatmul.mubr.f32.gmra.mrb[0].mxu0 %v811
      %v813 = vpop.f32.mrb[0].mxu0
      %v814 = vadd.f32 %v722, %v813
      %v815 = vpop.f32.mrb[0].mxu0
      %v816 = vadd.f32 %v724, %v815
      %817 = vdwg.mxu0
      %v818 = vand.u32 %v339, 4294901760
      %v819 = vsub.f32 %v339, %v818
      %v820 = vand.u32 %v819, 4294901760
      %821 = vmatprep.subr.mxu0 %v820
      %v822 = vand.u32 %v338, 4294901760
      %v823 = vsub.f32 %v338, %v822
      %v824 = vand.u32 %v823, 4294901760
      %825 = vmatpush1.msra.mxu0 %v824
      %v826 = vand.u32 %v341, 4294901760
      %v827 = vsub.f32 %v341, %v826
      %v828 = vand.u32 %v827, 4294901760
      %829 = vmatprep.subr.mxu0 %v828
      %v830 = vand.u32 %v340, 4294901760
      %v831 = vsub.f32 %v340, %v830
      %v832 = vand.u32 %v831, 4294901760
      %833 = vmatpush1.msra.mxu0 %v832
      %v834 = vand.u32 %v343, 4294901760
      %v835 = vsub.f32 %v343, %v834
      %v836 = vand.u32 %v835, 4294901760
      %837 = vmatprep.subr.mxu0 %v836
      %v838 = vand.u32 %v342, 4294901760
      %v839 = vsub.f32 %v342, %v838
      %v840 = vand.u32 %v839, 4294901760
      %841 = vmatpush1.msra.mxu0 %v840
      %v842 = vand.u32 %v345, 4294901760
      %v843 = vsub.f32 %v345, %v842
      %v844 = vand.u32 %v843, 4294901760
      %845 = vmatprep.subr.mxu0 %v844
      %v846 = vand.u32 %v344, 4294901760
      %v847 = vsub.f32 %v344, %v846
      %v848 = vand.u32 %v847, 4294901760
      %849 = vmatpush1.msra.mxu0 %v848
      %v850 = vand.u32 %v347, 4294901760
      %v851 = vsub.f32 %v347, %v850
      %v852 = vand.u32 %v851, 4294901760
      %853 = vmatprep.subr.mxu0 %v852
      %v854 = vand.u32 %v346, 4294901760
      %v855 = vsub.f32 %v346, %v854
      %v856 = vand.u32 %v855, 4294901760
      %857 = vmatpush1.msra.mxu0 %v856
      %v858 = vand.u32 %v349, 4294901760
      %v859 = vsub.f32 %v349, %v858
      %v860 = vand.u32 %v859, 4294901760
      %861 = vmatprep.subr.mxu0 %v860
      %v862 = vand.u32 %v348, 4294901760
      %v863 = vsub.f32 %v348, %v862
      %v864 = vand.u32 %v863, 4294901760
      %865 = vmatpush1.msra.mxu0 %v864
      %v866 = vand.u32 %v351, 4294901760
      %v867 = vsub.f32 %v351, %v866
      %v868 = vand.u32 %v867, 4294901760
      %869 = vmatprep.subr.mxu0 %v868
      %v870 = vand.u32 %v350, 4294901760
      %v871 = vsub.f32 %v350, %v870
      %v872 = vand.u32 %v871, 4294901760
      %873 = vmatpush1.msra.mxu0 %v872
      %v874 = vand.u32 %v353, 4294901760
      %v875 = vsub.f32 %v353, %v874
      %v876 = vand.u32 %v875, 4294901760
      %877 = vmatprep.subr.mxu0 %v876
      %v878 = vand.u32 %v352, 4294901760
      %v879 = vsub.f32 %v352, %v878
      %v880 = vand.u32 %v879, 4294901760
      %881 = vmatpush1.msra.mxu0 %v880
      %v882 = vand.u32 %v355, 4294901760
      %v883 = vsub.f32 %v355, %v882
      %v884 = vand.u32 %v883, 4294901760
      %885 = vmatprep.subr.mxu0 %v884
      %v886 = vand.u32 %v354, 4294901760
      %v887 = vsub.f32 %v354, %v886
      %v888 = vand.u32 %v887, 4294901760
      %889 = vmatpush1.msra.mxu0 %v888
      %890 = vmatprep.subr.mxu0 0.0
      %891 = vmatpush1.msra.mxu0 0.0
      %892 = vmatprep.subr.mxu0 0.0
      %893 = vmatpush1.msra.mxu0 0.0
      %894 = vmatprep.subr.mxu0 0.0
      %895 = vmatpush1.msra.mxu0 0.0
      %896 = vmatprep.subr.mxu0 0.0
      %897 = vmatpush1.msra.mxu0 0.0
      %898 = vmatprep.subr.mxu0 0.0
      %899 = vmatpush1.msra.mxu0 0.0
      %900 = vmatprep.subr.mxu0 0.0
      %901 = vmatpush1.msra.mxu0 0.0
      %902 = vmatprep.subr.mxu0 0.0
      %903 = vmatpush1.msra.mxu0 0.0
      %904 = vmatprep.subr.mxu0 0.0
      %905 = vmatpush1.msra.mxu0 0.0
      %906 = vmatprep.subr.mxu0 0.0
      %907 = vmatpush1.msra.mxu0 0.0
      %908 = vmatprep.subr.mxu0 0.0
      %909 = vmatpush1.msra.mxu0 0.0
      %910 = vmatprep.subr.mxu0 0.0
      %911 = vmatpush1.msra.mxu0 0.0
      %912 = vmatprep.subr.mxu0 0.0
      %913 = vmatpush1.msra.mxu0 0.0
      %914 = vmatprep.subr.mxu0 0.0
      %915 = vmatpush1.msra.mxu0 0.0
      %916 = vmatprep.subr.mxu0 0.0
      %917 = vmatpush1.msra.mxu0 0.0
      %918 = vmatprep.subr.mxu0 0.0
      %919 = vmatpush1.msra.mxu0 0.0
      %920 = vmatprep.subr.mxu0 0.0
      %921 = vmatpush1.msra.mxu0 0.0
      %922 = vmatprep.subr.mxu0 0.0
      %923 = vmatpush1.msra.mxu0 0.0
      %924 = vmatprep.subr.mxu0 0.0
      %925 = vmatpush1.msra.mxu0 0.0
      %926 = vmatprep.subr.mxu0 0.0
      %927 = vmatpush1.msra.mxu0 0.0
      %928 = vmatprep.subr.mxu0 0.0
      %929 = vmatpush1.msra.mxu0 0.0
      %930 = vmatprep.subr.mxu0 0.0
      %931 = vmatpush1.msra.mxu0 0.0
      %932 = vmatprep.subr.mxu0 0.0
      %933 = vmatpush1.msra.mxu0 0.0
      %934 = vmatprep.subr.mxu0 0.0
      %935 = vmatpush1.msra.mxu0 0.0
      %936 = vmatprep.mubr.f32.mxu0 0.0
      %v937 = vand.u32 %v359, 4294901760
      %938 = vmatmul.mubr.f32.gmra.mrb[0].mxu0 %v937
      %v939 = vpop.f32.mrb[0].mxu0
      %v940 = vadd.f32 %v814, %v939
      %v941 = vpop.f32.mrb[0].mxu0
      %v942 = vadd.f32 %v816, %v941
      %943 = vdwg.mxu0
      %v944 = vand.u32 %v339, 4294901760
      %945 = vmatprep.subr.mxu0 %v944
      %v946 = vand.u32 %v338, 4294901760
      %947 = vmatpush1.msra.mxu0 %v946
      %v948 = vand.u32 %v341, 4294901760
      %949 = vmatprep.subr.mxu0 %v948
      %v950 = vand.u32 %v340, 4294901760
      %951 = vmatpush1.msra.mxu0 %v950
      %v952 = vand.u32 %v343, 4294901760
      %953 = vmatprep.subr.mxu0 %v952
      %v954 = vand.u32 %v342, 4294901760
      %955 = vmatpush1.msra.mxu0 %v954
      %v956 = vand.u32 %v345, 4294901760
      %957 = vmatprep.subr.mxu0 %v956
      %v958 = vand.u32 %v344, 4294901760
      %959 = vmatpush1.msra.mxu0 %v958
      %v960 = vand.u32 %v347, 4294901760
      %961 = vmatprep.subr.mxu0 %v960
      %v962 = vand.u32 %v346, 4294901760
      %963 = vmatpush1.msra.mxu0 %v962
      %v964 = vand.u32 %v349, 4294901760
      %965 = vmatprep.subr.mxu0 %v964
      %v966 = vand.u32 %v348, 4294901760
      %967 = vmatpush1.msra.mxu0 %v966
      %v968 = vand.u32 %v351, 4294901760
      %969 = vmatprep.subr.mxu0 %v968
      %v970 = vand.u32 %v350, 4294901760
      %971 = vmatpush1.msra.mxu0 %v970
      %v972 = vand.u32 %v353, 4294901760
      %973 = vmatprep.subr.mxu0 %v972
      %v974 = vand.u32 %v352, 4294901760
      %975 = vmatpush1.msra.mxu0 %v974
      %v976 = vand.u32 %v355, 4294901760
      %977 = vmatprep.subr.mxu0 %v976
      %v978 = vand.u32 %v354, 4294901760
      %979 = vmatpush1.msra.mxu0 %v978
      %980 = vmatprep.subr.mxu0 0.0
      %981 = vmatpush1.msra.mxu0 0.0
      %982 = vmatprep.subr.mxu0 0.0
      %983 = vmatpush1.msra.mxu0 0.0
      %984 = vmatprep.subr.mxu0 0.0
      %985 = vmatpush1.msra.mxu0 0.0
      %986 = vmatprep.subr.mxu0 0.0
      %987 = vmatpush1.msra.mxu0 0.0
      %988 = vmatprep.subr.mxu0 0.0
      %989 = vmatpush1.msra.mxu0 0.0
      %990 = vmatprep.subr.mxu0 0.0
      %991 = vmatpush1.msra.mxu0 0.0
      %992 = vmatprep.subr.mxu0 0.0
      %993 = vmatpush1.msra.mxu0 0.0
      %994 = vmatprep.subr.mxu0 0.0
      %995 = vmatpush1.msra.mxu0 0.0
      %996 = vmatprep.subr.mxu0 0.0
      %997 = vmatpush1.msra.mxu0 0.0
      %998 = vmatprep.subr.mxu0 0.0
      %999 = vmatpush1.msra.mxu0 0.0
      %1000 = vmatprep.subr.mxu0 0.0
      %1001 = vmatpush1.msra.mxu0 0.0
      %1002 = vmatprep.subr.mxu0 0.0
      %1003 = vmatpush1.msra.mxu0 0.0
      %1004 = vmatprep.subr.mxu0 0.0
      %1005 = vmatpush1.msra.mxu0 0.0
      %1006 = vmatprep.subr.mxu0 0.0
      %1007 = vmatpush1.msra.mxu0 0.0
      %1008 = vmatprep.subr.mxu0 0.0
      %1009 = vmatpush1.msra.mxu0 0.0
      %1010 = vmatprep.subr.mxu0 0.0
      %1011 = vmatpush1.msra.mxu0 0.0
      %1012 = vmatprep.subr.mxu0 0.0
      %1013 = vmatpush1.msra.mxu0 0.0
      %1014 = vmatprep.subr.mxu0 0.0
      %1015 = vmatpush1.msra.mxu0 0.0
      %1016 = vmatprep.subr.mxu0 0.0
      %1017 = vmatpush1.msra.mxu0 0.0
      %1018 = vmatprep.subr.mxu0 0.0
      %1019 = vmatpush1.msra.mxu0 0.0
      %1020 = vmatprep.subr.mxu0 0.0
      %1021 = vmatpush1.msra.mxu0 0.0
      %1022 = vmatprep.subr.mxu0 0.0
      %1023 = vmatpush1.msra.mxu0 0.0
      %1024 = vmatprep.subr.mxu0 0.0
      %1025 = vmatpush1.msra.mxu0 0.0
      %1026 = vmatprep.mubr.f32.mxu0 0.0
      %v1027 = vand.u32 %v359, 4294901760
      %1028 = vmatmul.mubr.f32.gmra.mrb[0].mxu0 %v1027
      %v1029 = vpop.f32.mrb[0].mxu0
      %v1030 = vadd.f32 %v940, %v1029
      %v1031 = vpop.f32.mrb[0].mxu0
      %v1032 = vadd.f32 %v942, %v1031
      %1033 = vdwg.mxu0
      %v1035 = vcombine.high %v225, %v225
      %1037 = vst [vmem:[%s224] sm:$0xf] %v225
      %1038 = vst [vmem:[%s224 + $0x8] sm:$0xf] %v1035
      %v1041 = vrot.slane %v1030, 4
      %v1042 = vrot.slane %v1032, 4
      %1045 = vst [vmem:[%s224] sm:$0xf0] %v1041
      %1046 = vst [vmem:[%s224 + $0x8] sm:$0xf0] %v1042
      %1047 = vst [vmem:[%s224 + $0x10] sm:$0xf] %v1041
      %1048 = vst [vmem:[%s224 + $0x18] sm:$0xf] %v1042
      %p1049 = scmp.lt.s32.totalorder %s16, 1
      %s1050 = scalar_select %p1049, %s16, 1
      %s1051 = smul.addr %s1050, 4
      %s1052 = smul.addr %s1051, 8
      %s1053 = scalar_lea.vmem %s5, %s1052
      // Predicated region
      $region41: #{single_layer.1} parent=39 // pred_check
        %p1054 = pneg %p144
      $region42: #{single_layer.1} parent=39 // pred_check_branch
        %1056 = sbr.rel (%p1054) target = $region44
      $region43: #{single_layer.1} parent=39 // pred_region
        _
      $region44: #{single_layer.1} parent=39 // pred_fallthru
        _
    $region40: #{single_layer.1} parent=5 // pred_fallthru
      _
    %p1057 = scmp.le.s32.totalorder 2, %s11
    // Predicated region
    $region45: #{single_layer.1} parent=5 // pred_check
      %p1058 = pneg %p1057
    $region46: #{single_layer.1} parent=5 // pred_check_branch
      %1060 = sbr.rel (%p1058) target = $region48
    $region47: #{single_layer.1} parent=5 // pred_region
      %s1061 = ssub.s32 %s11, 2
      // Predicated region
      $region49: #{single_layer.1} parent=47 // pred_check
        %p1062 = pneg %p150
      $region50: #{single_layer.1} parent=47 // pred_check_branch
        %1064 = sbr.rel (%p1062) target = $region52
      $region51: #{single_layer.1} parent=47 // pred_region
        %p1065 = scmp.lt.s32.totalorder %s17, 1
        %s1066 = scalar_select %p1065, %s17, 1
        %s1067 = smul.addr %s1066, 4
        %s1068 = smul.addr %s1067, 8
        %s1069 = scalar_lea.vmem %s5, %s1068
      $region52: #{single_layer.1} parent=47 // pred_fallthru
        _
    $region48: #{single_layer.1} parent=5 // pred_fallthru
      _
  $region6: #{single_layer.1} parent=0 // loop_footer
    %s15 = sadd.s32 1, %s11
  $region7: #{single_layer.1} parent=0 // loop_footer_branch
    %10 = sbr.rel target = $region3
  $region8: #{single_layer.1} parent=0 // loop_exit
    _

</llo_original>
